<compile_context>
chip_gen: v6e
topology: v6e:2x2x1
jax: 0.10.0
libtpu: 0.0.40
codegen_flags: <defaults>
</compile_context>

<pallas_src>
import jax
import jax.numpy as jnp
from jax.experimental import pallas as pl
from jax.experimental.pallas import tpu as pltpu

# 7*5*5*6*7*8*10/5 sigmoid scale (compile-time constant).
SIG_SCALE = 7.0 * 5.0 * 5.0 * 6.0 * 7.0 * 8.0 * 10.0 / 5.0
HALF_SIG_SCALE = 0.5 * SIG_SCALE

SMALL_MAX = 32 * 1024          # <= 128 KiB f32: single grid-less call
MAX_CHUNK = 512 * 1024         # 2 MiB f32 per block (8 MiB double-buffered in+out)
MIN_CHUNK = 8 * 1024           # keep per-step DMAs >= 32 KiB
TARGET_GRID_STEPS = 8          # keep the grid long enough for pipelining / 2 TCs


def branched_kernel(s_ref, x_ref, o_ref):
    """s_ref (SMEM f32[8]): a0, a1, c0, c1, m0, m1, cadd, pnorm.

    out = relu( relu(x*a0+c0)*m0 + relu(x*a1+c1)*m1 + cadd
                + 0.5*SIG_SCALE*tanh(0.5*x) ) + pnorm
    with m_j = w2[j]*w3*5,
         cadd = (b2*w3 + b3)*5 + 6 + ||buff||_F + 0.5*SIG_SCALE,
         pnorm = ||param||_F   (all folded in the JAX wrapper).
    """
    x = x_ref[...]
    h0 = jnp.maximum(x * s_ref[0] + s_ref[2], 0.0) * s_ref[4]
    h1 = jnp.maximum(x * s_ref[1] + s_ref[3], 0.0) * s_ref[5]
    branch_2 = jnp.tanh(x * 0.5) * HALF_SIG_SCALE        # EUP path, full precision
    o_ref[...] = jnp.maximum(h0 + h1 + branch_2 + s_ref[6], 0.0) + s_ref[7]


def _fold_scalars(p):
    """Fold the weight stack + norms into 8 f32 scalars (pure JAX, outside kernel)."""
    w1 = p["W1"].reshape(2)           # Linear(1,2).weight (2,1)
    b1 = p["B1"].reshape(2)
    w2 = p["W2"].reshape(2)           # Linear(2,1).weight (1,2)
    b2 = p["B2"].reshape(())
    w3 = p["W3"].reshape(())          # Linear(1,1).weight (1,1)
    b3 = p["B3"].reshape(())
    m = w2 * w3 * 5.0
    cadd = ((b2 * w3 + b3) * 5.0
            + (2.0 + 1.0 * 8.0 / 2.0)
            + jnp.linalg.norm(p["buff"])
            + HALF_SIG_SCALE)         # sigmoid(x)*S == 0.5*S*tanh(x/2) + 0.5*S
    pnorm = jnp.linalg.norm(p["param"])
    return jnp.stack([w1[0], w1[1], b1[0], b1[1], m[0], m[1], cadd, pnorm]
                     ).astype(jnp.float32)


def _pick_chunk(n):
    """Block size in elements: lane-aligned, <= 2 MiB, grid kept >= ~8 steps."""
    chunk = max(MIN_CHUNK, min(MAX_CHUNK, pl.cdiv(n, TARGET_GRID_STEPS)))
    return pl.cdiv(chunk, 1024) * 1024   # multiple of 8 sublanes * 128 lanes


@jax.jit
def branched_model(x, params):
    """x: (B, 1) f32 -> (B, 1) f32, matching Branched_Model.forward."""
    B = x.shape[0]
    scalars = _fold_scalars(params)
    xf = x.reshape(-1)                   # contiguous flatten: free, no copy

    if B <= SMALL_MAX:
        # Grid-less single shot on a (1, B) lane-major view (full-array blocks).
        smem_spec = pl.BlockSpec(memory_space=pltpu.MemorySpace.SMEM)
        vmem_spec = pl.BlockSpec(memory_space=pltpu.MemorySpace.VMEM)
        out = pl.pallas_call(
            branched_kernel,
            out_shape=jax.ShapeDtypeStruct((1, B), jnp.float32),
            in_specs=[smem_spec, vmem_spec],
            out_specs=vmem_spec,
        )(scalars, xf.reshape(1, B))
    else:
        chunk = _pick_chunk(B)
        out = pl.pallas_call(
            branched_kernel,
            out_shape=jax.ShapeDtypeStruct((B,), jnp.float32),
            grid_spec=pltpu.PrefetchScalarGridSpec(
                num_scalar_prefetch=1,               # 8 folded f32 scalars -> SMEM once
                grid=(pl.cdiv(B, chunk),),           # ragged last block masked by Pallas
                in_specs=[pl.BlockSpec((chunk,), lambda i, s: (i,))],
                out_specs=pl.BlockSpec((chunk,), lambda i, s: (i,)),
            ),
            compiler_params=pltpu.CompilerParams(
                dimension_semantics=("parallel",)),
        )(scalars, xf)

    return out.reshape(B, 1)


def init_params(key, buff_shape=(4, 4)):
    """Deterministic init matching the shapes implied by Branched_Model.__init__."""
    ks = jax.random.split(key, 7)
    return {
        "W1": jax.random.normal(ks[0], (2, 1), jnp.float32) * 0.5,   # Linear(1,2).weight
        "B1": jax.random.normal(ks[1], (2,), jnp.float32) * 0.1,
        "W2": jax.random.normal(ks[2], (1, 2), jnp.float32) * 0.5,   # Linear(2,1).weight
        "B2": jax.random.normal(ks[3], (1,), jnp.float32) * 0.1,
        "W3": jax.random.normal(ks[4], (1, 1), jnp.float32) * 0.5,   # Linear(1,1).weight
        "B3": jax.random.normal(ks[5], (1,), jnp.float32) * 0.1,
        "buff": jax.random.normal(ks[6], buff_shape, jnp.float32),
        "param": jnp.zeros(buff_shape, jnp.float32),                 # Parameter(zeros_like(buff))
    }


def reference_forward(x, p):
    """Pure-JAX reference mirroring the PyTorch forward exactly (unfolded math)."""
    h = x @ p["W1"].T + p["B1"]
    h = jnp.maximum(h, 0.0)
    h = h @ p["W2"].T + p["B2"]
    h = h @ p["W3"].T + p["B3"]
    b1_out = h * 5.0 + 2.0 + 1.0 * 8.0 / 2.0
    b2_out = jax.nn.sigmoid(x) * 7.0 * 5.0 * 5.0 * 6.0 * 7.0 * 8.0 * 10.0 / 5.0
    combined = b1_out + b2_out + jnp.linalg.norm(p["buff"])
    return jnp.maximum(combined, 0.0) + jnp.linalg.norm(p["param"])


if __name__ == "__main__":
    key = jax.random.PRNGKey(0)
    kx, kp, kx2 = jax.random.split(key, 3)
    params = init_params(kp)

    # Small-B case (grid-less path).
    B = 8
    x = jax.random.normal(kx, (B, 1), jnp.float32)
    out = jax.block_until_ready(branched_model(x, params))
    ref = reference_forward(x, params)
    assert out.shape == (B, 1)
    assert jnp.allclose(out, ref, rtol=3e-5, atol=1e-3), (out[:4], ref[:4])

    # Larger-B case: 1-D gridded "parallel" path with a ragged last block
    # (exercises Pallas' masked tail writeback — no padding, no de-pad slice).
    B2 = 100_003
    x2 = jax.random.normal(kx2, (B2, 1), jnp.float32)
    out2 = jax.block_until_ready(branched_model(x2, params))
    ref2 = reference_forward(x2, params)
    assert out2.shape == (B2, 1)
    assert jnp.allclose(out2, ref2, rtol=3e-5, atol=1e-3)

    print("KERNEL_OK")
</pallas_src>

<mosaic_0001>
module attributes {stable_mosaic.version = 11 : i64} {
  func.func @branched_kernel(%arg0: memref<8xf32, #tpu.memory_space<smem>>, %arg1: memref<1x8xf32, #tpu.memory_space<vmem>>, %arg2: memref<1x8xf32, #tpu.memory_space<vmem>>) attributes {dimension_semantics = [], scalar_prefetch = 0 : i64, scratch_operands = 0 : i64, tpu.core_type = #tpu.core_type<tc>} {
    %c0 = arith.constant 0 : index
    %c0_0 = arith.constant 0 : index
    %0 = vector.load %arg1[%c0, %c0_0] : memref<1x8xf32, #tpu.memory_space<vmem>>, vector<1x8xf32>
    %c0_1 = arith.constant 0 : index
    %1 = memref.load %arg0[%c0_1] : memref<8xf32, #tpu.memory_space<smem>>
    %2 = vector.broadcast %1 : f32 to vector<1x8xf32>
    %3 = arith.mulf %0, %2 : vector<1x8xf32>
    %c2 = arith.constant 2 : index
    %4 = memref.load %arg0[%c2] : memref<8xf32, #tpu.memory_space<smem>>
    %5 = vector.broadcast %4 : f32 to vector<1x8xf32>
    %6 = arith.addf %3, %5 : vector<1x8xf32>
    %cst = arith.constant 0.000000e+00 : f32
    %7 = vector.broadcast %cst : f32 to vector<1x8xf32>
    %8 = arith.maximumf %6, %7 : vector<1x8xf32>
    %c4 = arith.constant 4 : index
    %9 = memref.load %arg0[%c4] : memref<8xf32, #tpu.memory_space<smem>>
    %10 = vector.broadcast %9 : f32 to vector<1x8xf32>
    %11 = arith.mulf %8, %10 : vector<1x8xf32>
    %c1 = arith.constant 1 : index
    %12 = memref.load %arg0[%c1] : memref<8xf32, #tpu.memory_space<smem>>
    %13 = vector.broadcast %12 : f32 to vector<1x8xf32>
    %14 = arith.mulf %0, %13 : vector<1x8xf32>
    %c3 = arith.constant 3 : index
    %15 = memref.load %arg0[%c3] : memref<8xf32, #tpu.memory_space<smem>>
    %16 = vector.broadcast %15 : f32 to vector<1x8xf32>
    %17 = arith.addf %14, %16 : vector<1x8xf32>
    %cst_2 = arith.constant 0.000000e+00 : f32
    %18 = vector.broadcast %cst_2 : f32 to vector<1x8xf32>
    %19 = arith.maximumf %17, %18 : vector<1x8xf32>
    %c5 = arith.constant 5 : index
    %20 = memref.load %arg0[%c5] : memref<8xf32, #tpu.memory_space<smem>>
    %21 = vector.broadcast %20 : f32 to vector<1x8xf32>
    %22 = arith.mulf %19, %21 : vector<1x8xf32>
    %cst_3 = arith.constant 5.000000e-01 : f32
    %23 = vector.broadcast %cst_3 : f32 to vector<1x8xf32>
    %24 = arith.mulf %0, %23 : vector<1x8xf32>
    %25 = math.tanh %24 : vector<1x8xf32>
    %cst_4 = arith.constant 5.880000e+04 : f32
    %26 = vector.broadcast %cst_4 : f32 to vector<1x8xf32>
    %27 = arith.mulf %25, %26 : vector<1x8xf32>
    %28 = arith.addf %11, %22 : vector<1x8xf32>
    %29 = arith.addf %28, %27 : vector<1x8xf32>
    %c6 = arith.constant 6 : index
    %30 = memref.load %arg0[%c6] : memref<8xf32, #tpu.memory_space<smem>>
    %31 = vector.broadcast %30 : f32 to vector<1x8xf32>
    %32 = arith.addf %29, %31 : vector<1x8xf32>
    %cst_5 = arith.constant 0.000000e+00 : f32
    %33 = vector.broadcast %cst_5 : f32 to vector<1x8xf32>
    %34 = arith.maximumf %32, %33 : vector<1x8xf32>
    %c7 = arith.constant 7 : index
    %35 = memref.load %arg0[%c7] : memref<8xf32, #tpu.memory_space<smem>>
    %36 = vector.broadcast %35 : f32 to vector<1x8xf32>
    %37 = arith.addf %34, %36 : vector<1x8xf32>
    %c0_6 = arith.constant 0 : index
    %c0_7 = arith.constant 0 : index
    %38 = vector.load %arg2[%c0_6, %c0_7] : memref<1x8xf32, #tpu.memory_space<vmem>>, vector<1x8xf32>
    tpu.vector_store %arg2[%c0_6, %c0_7], %37 {strides = array<i32>} : memref<1x8xf32, #tpu.memory_space<vmem>>, vector<1x8xf32>,
    return
  }
}

</mosaic_0001>

<llo_original>
// kernel: branched_model.1
$region0: #{branched_model.1}
  #allocation0 [shape = 'u32[]', space=smem, size = 0x4, offset = 0x4, fixed_abs, tag = 'smem constant byte address 0x4 - core index']
  #allocation1 [shape = 'u32[144,128]{1,0:T(1,128)}', space=vmem, size = 0x12000, scoped, tag = 'internal scratch']
  %s0 = inlined_call_operand.vmem [shape: f32[8], index: 0, kind: input, shape index: {}]
  %s1 = inlined_call_operand.vmem [shape: f32[1,8], index: 1, kind: input, shape index: {}]
  %s2 = inlined_call_operand.hbm [shape: f32[1,8], index: 2, kind: output, shape index: {}]
  %s3 = sld [smem:[#allocation0]]
  $region22: #{branched_model.1} parent=0
    _
  %s5 = ssub.s32 1, %s3
  %s6 = scalar_select 0, %s5, %s3
  $region1: #{branched_model.1} parent=0
    #allocation2 [shape = 'u8[512]{0}', space=smem, size = 0x200, scoped, tag = 'input window, operand 0, single buffered']
    #allocation3 [shape = 's32[1]{0}', space=sflag, size = 0x4, scoped, tag = 'scoped memory for branched_model.1']
    #allocation4 [shape = 's32[1]{0}', space=sflag, size = 0x4, scoped, tag = 'scoped memory for branched_model.1']
    #allocation5 [shape = 'u8[512]{0}', space=vmem, size = 0x400, scoped, tag = 'output window, operand 0, single buffered']
    %7 = vsyncpa [#allocation4], 0
    %8 = vsyncpa [#allocation3], 0
    // Predicated region
    $region2: #{branched_model.1} parent=1 // pred_check
      _
    $region3: #{branched_model.1} parent=1 // pred_check_branch
      %10 = sbr.rel (0) target = $region5
    $region4: #{branched_model.1} parent=1 // pred_region
      %s12 = ssub.s32 16, 16
      %13 = vsyncadd [#allocation4], %s12
      %s15 = sshll.u32 %s0, 4
      %s16 = int_to_ptr.vmem [resolvable:$true] %s15
      %18 = dma.vmem_to_smem %s16, 16, [#allocation2], [#allocation4]
    $region5: #{branched_model.1} parent=1 // pred_fallthru
      _
    // Predicated region
    $region6: #{branched_model.1} parent=1 // pred_check
      _
    $region7: #{branched_model.1} parent=1 // pred_check_branch
      %20 = sbr.rel (0) target = $region9
    $region8: #{branched_model.1} parent=1 // pred_region
      _
    $region9: #{branched_model.1} parent=1 // pred_fallthru
      _
    // Predicated region
    $region10: #{branched_model.1} parent=1 // pred_check
      _
    $region11: #{branched_model.1} parent=1 // pred_check_branch
      %22 = sbr.rel (0) target = $region13
    $region12: #{branched_model.1} parent=1 // pred_region
      %23 = dma.done [#allocation4], 16
    $region13: #{branched_model.1} parent=1 // pred_fallthru
      _
    %24 = sfence
    %v25 = vld [vmem:[%s1] sm:$0x1]
    %s26 = sld [smem:[#allocation2]]
    %v27 = vstv %s26
    %v28 = vmul.f32 %v25, %v27
    %s29 = sld [smem:[#allocation2 + $0x2]]
    %v30 = vstv %s29
    %v31 = vadd.f32 %v28, %v30
    %v32 = vmax.f32 %v31, 0.0
    %s33 = sld [smem:[#allocation2 + $0x4]]
    %v34 = vstv %s33
    %v35 = vmul.f32 %v32, %v34
    %s36 = sld [smem:[#allocation2 + $0x1]]
    %v37 = vstv %s36
    %v38 = vmul.f32 %v25, %v37
    %s39 = sld [smem:[#allocation2 + $0x3]]
    %v40 = vstv %s39
    %v41 = vadd.f32 %v38, %v40
    %v42 = vmax.f32 %v41, 0.0
    %s43 = sld [smem:[#allocation2 + $0x5]]
    %v44 = vstv %s43
    %v45 = vmul.f32 %v42, %v44
    %v46 = vmul.f32 %v25, 0.5
    %v47 = vtanh.pop %v46
    %v48 = vmul.f32 %v47, 58800.0
    %v49 = vadd.f32 %v35, %v45
    %v50 = vadd.f32 %v49, %v48
    %s51 = sld [smem:[#allocation2 + $0x6]]
    %v52 = vstv %s51
    %v53 = vadd.f32 %v50, %v52
    %v54 = vmax.f32 %v53, 0.0
    %s55 = sld [smem:[#allocation2 + $0x7]]
    %v56 = vstv %s55
    %v57 = vadd.f32 %v54, %v56
    %vm58 = vcmask 57344
    %59 = vst.msk [vmem:[#allocation5] sm:$0x1] %vm58, %v57
    // Predicated region
    $region14: #{branched_model.1} parent=1 // pred_check
      _
    $region15: #{branched_model.1} parent=1 // pred_check_branch
      %61 = sbr.rel (0) target = $region17
    $region16: #{branched_model.1} parent=1 // pred_region
      %s63 = ssub.s32 16, 16
      %64 = vsyncadd [#allocation3], %s63
      %s66 = sshll.u32 [#allocation5], 4
      %s67 = int_to_ptr.vmem [resolvable:$true] %s66
      %69 = dma.vmem_to_hbm [thread:$0]  %s67, 16, %s2, [#allocation3]
    $region17: #{branched_model.1} parent=1 // pred_fallthru
      _
    // Predicated region
    $region18: #{branched_model.1} parent=1 // pred_check
      _
    $region19: #{branched_model.1} parent=1 // pred_check_branch
      %71 = sbr.rel (0) target = $region21
    $region20: #{branched_model.1} parent=1 // pred_region
      %72 = dma.done [#allocation3], 16
    $region21: #{branched_model.1} parent=1 // pred_fallthru
      _
    %73 = vsyncpa [#allocation3], 1
    %74 = vsyncpa [#allocation4], 1

</llo_original>
